<compile_context>
chip_gen: v6e
topology: v6e:2x2x1
jax: 0.10.0
libtpu: 0.0.40
codegen_flags: <defaults>
</compile_context>

<pallas_src>
import jax
import jax.numpy as jnp
from jax.experimental import pallas as pl
from jax.experimental.pallas import tpu as pltpu


_NCORES = 2             # leading "parallel" grid axis (v7x dual TensorCore)
_DEFAULT_TILE_D = 32768  # feature elements per grid step (multiple of 128)


def _round_up(x, m):
    return (x + m - 1) // m * m


def _gram_pair_kernel(x1_ref, x2_ref, g1_ref, g2_ref):
    """Accumulate BxB Gram matrices of the batch-centered rows of both inputs.

    x*_ref : (B, TILE_D) tile of the zero-padded flattened input, native dtype.
    g*_ref : (1, B, B) f32 per-core partial Gram accumulator (output-resident
             across the inner "arbitrary" reduction axis).
    """

    @pl.when(pl.program_id(1) == 0)
    def _init():
        g1_ref[...] = jnp.zeros_like(g1_ref)
        g2_ref[...] = jnp.zeros_like(g2_ref)

    def tile_gram(x):
        x = x.astype(jnp.float32)                    # f32 math (v5e VPU has no bf16)
        xc = x - jnp.mean(x, axis=0, keepdims=True)  # batch-centering is per-column
        # (B, T) . (B, T)^T -> (B, B); contraction over the long feature tile.
        return jax.lax.dot_general(
            xc, xc, (((1,), (1,)), ((), ())),
            preferred_element_type=jnp.float32)

    g1_ref[...] += tile_gram(x1_ref[...])[None]
    g2_ref[...] += tile_gram(x2_ref[...])[None]


def diff_loss(input1, input2, *, tile_d=_DEFAULT_TILE_D):
    """Pallas implementation of DiffLoss.forward. Returns a scalar f32."""
    if input1.shape[0] != input2.shape[0]:
        raise ValueError("batch dims must match")
    b = input1.shape[0]
    x1 = input1.reshape(b, -1)        # keep native dtype: stream bf16/f32 as-is
    x2 = input2.reshape(b, -1)
    d1, d2 = x1.shape[1], x2.shape[1]

    # ---- plan the feature tiling (shared grid for both inputs) ----
    dmax = max(d1, d2)
    tile = max(128, min(_round_up(tile_d, 128), _round_up(dmax, 128)))
    nt = pl.cdiv(dmax, tile)
    ncores = _NCORES if nt >= _NCORES else 1
    nt = _round_up(nt, ncores)
    dp = nt * tile
    npc = nt // ncores                # feature tiles handled per core

    def pad(x):
        d = x.shape[1]
        if d == dp:
            return x
        # zero columns: centered to zero, contribute nothing to the Gram.
        return jnp.pad(x, ((0, 0), (0, dp - d)))

    x1p, x2p = pad(x1), pad(x2)

    blk_bytes = b * tile * max(x1p.dtype.itemsize, x2p.dtype.itemsize)
    cost = pl.CostEstimate(
        flops=int(4 * b * b * dp + 4 * b * dp),   # two (B,T)x(T,B) grams + centering
        transcendentals=0,
        bytes_accessed=int(x1p.size * x1p.dtype.itemsize
                           + x2p.size * x2p.dtype.itemsize
                           + 2 * ncores * b * b * 4),
    )

    x_spec = pl.BlockSpec((b, tile), lambda c, k: (0, c * npc + k))
    g_spec = pl.BlockSpec((1, b, b), lambda c, k: (c, 0, 0))

    g1_parts, g2_parts = pl.pallas_call(
        _gram_pair_kernel,
        grid=(ncores, npc),
        in_specs=[x_spec, x_spec],
        out_specs=[g_spec, g_spec],
        out_shape=[jax.ShapeDtypeStruct((ncores, b, b), jnp.float32),
                   jax.ShapeDtypeStruct((ncores, b, b), jnp.float32)],
        compiler_params=pltpu.CompilerParams(
            # outer axis: core-parallel on v7x; inner axis: feature reduction.
            dimension_semantics=("parallel", "arbitrary"),
            # 2 inputs x 2 pipeline buffers x (B, tile) blocks + tiny outputs;
            # always well inside every chip's default scoped VMEM.
            vmem_limit_bytes=int(max(16 * 1024 * 1024, 8 * blk_bytes)),
        ),
        cost_estimate=cost,
    )(x1p, x2p)

    # ---- tiny BxB epilogue (needs cross-core totals; negligible work) ----
    g1 = jnp.sum(g1_parts, axis=0)            # (B, B) f32, centered-row Gram
    g2 = jnp.sum(g2_parts, axis=0)
    n1 = jnp.sqrt(jnp.diagonal(g1)) + 1e-6    # per-row L2 norms (+ torch's eps)
    n2 = jnp.sqrt(jnp.diagonal(g2)) + 1e-6
    g1n = g1 / (n1[:, None] * n1[None, :])
    g2n = g2 / (n2[:, None] * n2[None, :])
    # sum((x1n^T @ x2n)^2) == <G1n, G2n>_F ; mean divides by D1*D2.
    return jnp.sum(g1n * g2n) / jnp.float32(d1 * d2)


def _diff_loss_ref(input1, input2):
    """Pure-JAX reference mirroring the PyTorch code, for validation."""
    b = input1.shape[0]
    x1 = input1.reshape(b, -1).astype(jnp.float32)
    x2 = input2.reshape(b, -1).astype(jnp.float32)
    x1 = x1 - jnp.mean(x1, axis=0, keepdims=True)
    x2 = x2 - jnp.mean(x2, axis=0, keepdims=True)
    x1 = x1 / (jnp.linalg.norm(x1, axis=1, keepdims=True) + 1e-6)
    x2 = x2 / (jnp.linalg.norm(x2, axis=1, keepdims=True) + 1e-6)
    return jnp.mean((x1.T @ x2) ** 2)


if __name__ == "__main__":
    # DiffLoss has no learnable parameters; only inputs are needed.
    key = jax.random.PRNGKey(0)
    k1, k2 = jax.random.split(key)
    # NCHW-shaped feature maps, flattened inside diff_loss: B=2, C=4, H=W=16
    input1 = jax.random.normal(k1, (2, 4, 16, 16), dtype=jnp.float32)
    input2 = jax.random.normal(k2, (2, 4, 16, 16), dtype=jnp.float32)

    ref = jax.block_until_ready(_diff_loss_ref(input1, input2))

    # default (single-tile) path
    loss = jax.block_until_ready(diff_loss(input1, input2))
    assert jnp.allclose(loss, ref, rtol=1e-5, atol=1e-7), (loss, ref)

    # multi-tile + dual-core reduction path (exercises accumulation / pl.when)
    loss_tiled = jax.block_until_ready(diff_loss(input1, input2, tile_d=256))
    assert jnp.allclose(loss_tiled, ref, rtol=1e-5, atol=1e-7), (loss_tiled, ref)

    # native-dtype streaming path (bf16 in HBM, f32 math in-kernel)
    i1_bf, i2_bf = input1.astype(jnp.bfloat16), input2.astype(jnp.bfloat16)
    loss_bf16 = jax.block_until_ready(diff_loss(i1_bf, i2_bf))
    ref_bf16 = jax.block_until_ready(_diff_loss_ref(i1_bf, i2_bf))
    assert jnp.allclose(loss_bf16, ref_bf16, rtol=1e-4, atol=1e-6), (loss_bf16, ref_bf16)

    print("KERNEL_OK")
</pallas_src>

<mosaic_0001>
module attributes {stable_mosaic.version = 11 : i64} {
  func.func @_gram_pair_kernel(%arg0: i32, %arg1: i32, %arg2: memref<2x1024xf32, #tpu.memory_space<vmem>>, %arg3: memref<2x1024xf32, #tpu.memory_space<vmem>>, %arg4: memref<1x2x2xf32, #tpu.memory_space<vmem>>, %arg5: memref<1x2x2xf32, #tpu.memory_space<vmem>>) attributes {dimension_semantics = [#tpu.dimension_semantics<parallel>, #tpu.dimension_semantics<arbitrary>], iteration_bounds = array<i64: 1, 1>, scalar_prefetch = 0 : i64, scratch_operands = 0 : i64, tpu.core_type = #tpu.core_type<tc>, window_params = [{transform_indices = @transform_0, window_bounds = array<i64: 2, 1024>}, {transform_indices = @transform_1, window_bounds = array<i64: 2, 1024>}, {transform_indices = @transform_2, window_bounds = array<i64: 1, 2, 2>}, {transform_indices = @transform_3, window_bounds = array<i64: 1, 2, 2>}]} {
    %c0_i32 = arith.constant 0 : i32
    %0 = arith.cmpi eq, %arg1, %c0_i32 : i32
    %1 = arith.extui %0 : i1 to i32
    %c0_i32_0 = arith.constant 0 : i32
    %2 = arith.cmpi ne, %1, %c0_i32_0 : i32
    scf.if %2 {
      %cst_21 = arith.constant 0.000000e+00 : f32
      %27 = vector.broadcast %cst_21 : f32 to vector<1x2x2xf32>
      %c0_22 = arith.constant 0 : index
      %c0_23 = arith.constant 0 : index
      %c0_24 = arith.constant 0 : index
      %28 = vector.load %arg4[%c0_22, %c0_23, %c0_24] : memref<1x2x2xf32, #tpu.memory_space<vmem>>, vector<1x2x2xf32>
      tpu.vector_store %arg4[%c0_22, %c0_23, %c0_24], %27 {strides = array<i32>} : memref<1x2x2xf32, #tpu.memory_space<vmem>>, vector<1x2x2xf32>,
      %cst_25 = arith.constant 0.000000e+00 : f32
      %29 = vector.broadcast %cst_25 : f32 to vector<1x2x2xf32>
      %c0_26 = arith.constant 0 : index
      %c0_27 = arith.constant 0 : index
      %c0_28 = arith.constant 0 : index
      %30 = vector.load %arg5[%c0_26, %c0_27, %c0_28] : memref<1x2x2xf32, #tpu.memory_space<vmem>>, vector<1x2x2xf32>
      tpu.vector_store %arg5[%c0_26, %c0_27, %c0_28], %29 {strides = array<i32>} : memref<1x2x2xf32, #tpu.memory_space<vmem>>, vector<1x2x2xf32>,
    } else {
    }
    %c0 = arith.constant 0 : index
    %c0_1 = arith.constant 0 : index
    %c0_2 = arith.constant 0 : index
    %3 = vector.load %arg4[%c0, %c0_1, %c0_2] : memref<1x2x2xf32, #tpu.memory_space<vmem>>, vector<1x2x2xf32>
    %c0_3 = arith.constant 0 : index
    %c0_4 = arith.constant 0 : index
    %4 = vector.load %arg2[%c0_3, %c0_4] : memref<2x1024xf32, #tpu.memory_space<vmem>>, vector<2x1024xf32>
    %cst = arith.constant dense<0.000000e+00> : vector<1024xf32>
    %5 = vector.multi_reduction <add>, %4, %cst [0] : vector<2x1024xf32> to vector<1024xf32>
    %6 = vector.shape_cast %5 : vector<1024xf32> to vector<1x1024xf32>
    %cst_5 = arith.constant 2.000000e+00 : f32
    %7 = vector.broadcast %cst_5 : f32 to vector<1x1024xf32>
    %8 = arith.divf %6, %7 : vector<1x1024xf32>
    %9 = vector.broadcast %8 : vector<1x1024xf32> to vector<2x1024xf32>
    %10 = arith.subf %4, %9 : vector<2x1024xf32>
    %cst_6 = arith.constant dense<0.000000e+00> : vector<2x2xf32>
    %11 = tpu.matmul %10, %10, %cst_6 {dimension_numbers = #tpu.dot_dimension_numbers<[1], [1], [0], [0], [0, 0, 1, 0], [], []>} : vector<2x1024xf32>, vector<2x1024xf32>, vector<2x2xf32> -> vector<2x2xf32>
    %12 = vector.shape_cast %11 : vector<2x2xf32> to vector<1x2x2xf32>
    %13 = arith.addf %3, %12 : vector<1x2x2xf32>
    %c0_7 = arith.constant 0 : index
    %c0_8 = arith.constant 0 : index
    %c0_9 = arith.constant 0 : index
    %14 = vector.load %arg4[%c0_7, %c0_8, %c0_9] : memref<1x2x2xf32, #tpu.memory_space<vmem>>, vector<1x2x2xf32>
    tpu.vector_store %arg4[%c0_7, %c0_8, %c0_9], %13 {strides = array<i32>} : memref<1x2x2xf32, #tpu.memory_space<vmem>>, vector<1x2x2xf32>,
    %c0_10 = arith.constant 0 : index
    %c0_11 = arith.constant 0 : index
    %c0_12 = arith.constant 0 : index
    %15 = vector.load %arg5[%c0_10, %c0_11, %c0_12] : memref<1x2x2xf32, #tpu.memory_space<vmem>>, vector<1x2x2xf32>
    %c0_13 = arith.constant 0 : index
    %c0_14 = arith.constant 0 : index
    %16 = vector.load %arg3[%c0_13, %c0_14] : memref<2x1024xf32, #tpu.memory_space<vmem>>, vector<2x1024xf32>
    %cst_15 = arith.constant dense<0.000000e+00> : vector<1024xf32>
    %17 = vector.multi_reduction <add>, %16, %cst_15 [0] : vector<2x1024xf32> to vector<1024xf32>
    %18 = vector.shape_cast %17 : vector<1024xf32> to vector<1x1024xf32>
    %cst_16 = arith.constant 2.000000e+00 : f32
    %19 = vector.broadcast %cst_16 : f32 to vector<1x1024xf32>
    %20 = arith.divf %18, %19 : vector<1x1024xf32>
    %21 = vector.broadcast %20 : vector<1x1024xf32> to vector<2x1024xf32>
    %22 = arith.subf %16, %21 : vector<2x1024xf32>
    %cst_17 = arith.constant dense<0.000000e+00> : vector<2x2xf32>
    %23 = tpu.matmul %22, %22, %cst_17 {dimension_numbers = #tpu.dot_dimension_numbers<[1], [1], [0], [0], [0, 0, 1, 0], [], []>} : vector<2x1024xf32>, vector<2x1024xf32>, vector<2x2xf32> -> vector<2x2xf32>
    %24 = vector.shape_cast %23 : vector<2x2xf32> to vector<1x2x2xf32>
    %25 = arith.addf %15, %24 : vector<1x2x2xf32>
    %c0_18 = arith.constant 0 : index
    %c0_19 = arith.constant 0 : index
    %c0_20 = arith.constant 0 : index
    %26 = vector.load %arg5[%c0_18, %c0_19, %c0_20] : memref<1x2x2xf32, #tpu.memory_space<vmem>>, vector<1x2x2xf32>
    tpu.vector_store %arg5[%c0_18, %c0_19, %c0_20], %25 {strides = array<i32>} : memref<1x2x2xf32, #tpu.memory_space<vmem>>, vector<1x2x2xf32>,
    return
  }
  func.func @transform_0(%arg0: i32, %arg1: i32) -> (i32, i32) {
    %c1_i32 = arith.constant 1 : i32
    %0 = arith.muli %arg0, %c1_i32 : i32
    %1 = arith.addi %0, %arg1 : i32
    %c0_i32 = arith.constant 0 : i32
    %c0_i32_0 = arith.constant 0 : i32
    return %c0_i32, %1 : i32, i32
  }
  func.func @transform_1(%arg0: i32, %arg1: i32) -> (i32, i32) {
    %c1_i32 = arith.constant 1 : i32
    %0 = arith.muli %arg0, %c1_i32 : i32
    %1 = arith.addi %0, %arg1 : i32
    %c0_i32 = arith.constant 0 : i32
    %c0_i32_0 = arith.constant 0 : i32
    return %c0_i32, %1 : i32, i32
  }
  func.func @transform_2(%arg0: i32, %arg1: i32) -> (i32, i32, i32) {
    %c0_i32 = arith.constant 0 : i32
    %c0_i32_0 = arith.constant 0 : i32
    %c0_i32_1 = arith.constant 0 : i32
    return %arg0, %c0_i32, %c0_i32_0 : i32, i32, i32
  }
  func.func @transform_3(%arg0: i32, %arg1: i32) -> (i32, i32, i32) {
    %c0_i32 = arith.constant 0 : i32
    %c0_i32_0 = arith.constant 0 : i32
    %c0_i32_1 = arith.constant 0 : i32
    return %arg0, %c0_i32, %c0_i32_0 : i32, i32, i32
  }
}

</mosaic_0001>

<llo_original>
// kernel: tpu_custom_call.1
$region0: #{tpu_custom_call.1}
  #allocation0 [shape = 'u32[]', space=smem, size = 0x4, offset = 0x4, fixed_abs, tag = 'smem constant byte address 0x4 - core index']
  #allocation1 [shape = 'u32[144,128]{1,0:T(1,128)}', space=vmem, size = 0x12000, scoped, tag = 'internal scratch']
  %s0 = inlined_call_operand.hbm [shape: f32[2,1024], index: 0, kind: input, shape index: {}]
  %s1 = inlined_call_operand.hbm [shape: f32[2,1024], index: 1, kind: input, shape index: {}]
  %s2 = inlined_call_operand.hbm [shape: f32[1,2,2], index: 2, kind: output, shape index: {0}]
  %s3 = inlined_call_operand.hbm [shape: f32[1,2,2], index: 3, kind: output, shape index: {1}]
  %4 = xla_tuple %s2, %s3
  %s5 = sld [smem:[#allocation0]]
  $region38: #{tpu_custom_call.1} parent=0
    _
  %s7 = ssub.s32 1, %s5
  %s8 = scalar_select 0, %s7, %s5
  $region1: #{tpu_custom_call.1} parent=0
    #allocation2 [shape = 'u8[8192]{0}', space=vmem, size = 0x2000, scoped, tag = 'input window, operand 0, single buffered']
    #allocation3 [shape = 's32[1]{0}', space=sflag, size = 0x4, scoped, tag = 'scoped memory for tpu_custom_call.1']
    #allocation4 [shape = 's32[1]{0}', space=sflag, size = 0x4, scoped, tag = 'scoped memory for tpu_custom_call.1']
    #allocation5 [shape = 'u8[8192]{0}', space=vmem, size = 0x2000, scoped, tag = 'input window, operand 1, single buffered']
    #allocation6 [shape = 's32[1]{0}', space=sflag, size = 0x4, scoped, tag = 'scoped memory for tpu_custom_call.1']
    #allocation7 [shape = 'u8[1024]{0}', space=vmem, size = 0x400, scoped, tag = 'output window, operand 0, single buffered']
    #allocation8 [shape = 'u8[1024]{0}', space=vmem, size = 0x400, scoped, tag = 'output window, operand 1, single buffered']
    #allocation9 [shape = 's32[1]{0}', space=sflag, size = 0x4, scoped, tag = 'scoped memory for tpu_custom_call.1']
    %9 = vsyncpa [#allocation3], 0
    %10 = vsyncpa [#allocation6], 0
    %11 = vsyncpa [#allocation4], 0
    %12 = vsyncpa [#allocation9], 0
    // Predicated region
    $region2: #{tpu_custom_call.1} parent=1 // pred_check
      _
    $region3: #{tpu_custom_call.1} parent=1 // pred_check_branch
      %14 = sbr.rel (0) target = $region5
    $region4: #{tpu_custom_call.1} parent=1 // pred_region
      %s15 = sadd.s32 0, 0
      %s16 = smul.u32 8, %s15
      %s18 = ssub.s32 256, 256
      %19 = vsyncadd [#allocation3], %s18
      %s20 = smul.addr %s16, 32
      %s21 = scalar_lea.hbm %s0, %s20
      %s23 = sshll.u32 [#allocation2], 4
      %s24 = int_to_ptr.vmem [resolvable:$true] %s23
      %26 = dma.hbm_to_vmem [thread:$0]  %s21, 256, %s24, [#allocation3]
    $region5: #{tpu_custom_call.1} parent=1 // pred_fallthru
      _
    // Predicated region
    $region6: #{tpu_custom_call.1} parent=1 // pred_check
      _
    $region7: #{tpu_custom_call.1} parent=1 // pred_check_branch
      %28 = sbr.rel (0) target = $region9
    $region8: #{tpu_custom_call.1} parent=1 // pred_region
      %s29 = sadd.s32 0, 0
      %s30 = smul.u32 8, %s29
      %s32 = ssub.s32 256, 256
      %33 = vsyncadd [#allocation6], %s32
      %s34 = smul.addr %s30, 32
      %s35 = scalar_lea.hbm %s1, %s34
      %s37 = sshll.u32 [#allocation5], 4
      %s38 = int_to_ptr.vmem [resolvable:$true] %s37
      %40 = dma.hbm_to_vmem [thread:$0]  %s35, 256, %s38, [#allocation6]
    $region9: #{tpu_custom_call.1} parent=1 // pred_fallthru
      _
    // Predicated region
    $region10: #{tpu_custom_call.1} parent=1 // pred_check
      _
    $region11: #{tpu_custom_call.1} parent=1 // pred_check_branch
      %42 = sbr.rel (0) target = $region13
    $region12: #{tpu_custom_call.1} parent=1 // pred_region
      %43 = dma.done [#allocation3], 256
    $region13: #{tpu_custom_call.1} parent=1 // pred_fallthru
      _
    // Predicated region
    $region14: #{tpu_custom_call.1} parent=1 // pred_check
      _
    $region15: #{tpu_custom_call.1} parent=1 // pred_check_branch
      %45 = sbr.rel (0) target = $region17
    $region16: #{tpu_custom_call.1} parent=1 // pred_region
      %46 = dma.done [#allocation6], 256
    $region17: #{tpu_custom_call.1} parent=1 // pred_fallthru
      _
    %s47 = sadd.s32 0, 0
    %s48 = smul.u32 8, %s47
    %s49 = sadd.s32 0, 0
    %s50 = smul.u32 8, %s49
    %p51 = scmp.eq.s32.totalorder 0, 0
    // Predicated region
    $region18: #{tpu_custom_call.1} parent=1 // pred_check
      %p52 = pneg %p51
    $region19: #{tpu_custom_call.1} parent=1 // pred_check_branch
      %54 = sbr.rel (%p52) target = $region21
    $region20: #{tpu_custom_call.1} parent=1 // pred_region
      %vm55 = vcmask 9216
      %56 = vst.msk [vmem:[#allocation7] sm:$0x3] %vm55, 0.0
      %57 = vst.msk [vmem:[#allocation8] sm:$0x3] %vm55, 0.0
    $region21: #{tpu_custom_call.1} parent=1 // pred_fallthru
      _
    %v58 = vld [vmem:[#allocation7] sm:$0x3]
    %v59 = vld [vmem:[#allocation2] sm:$0xff]
    %v60 = vld [vmem:[#allocation2 + $0x8] sm:$0xff]
    %v63 = vcombine.high %v59, %v59
    %v65 = vunpack.c.l.s4 1983009808
    %v66 = vunpack.c.0.s8 %v65
    %v67 = vlaneseq
    %v68 = vshrl.u32 %v67, 7
    %v69 = vsub.s32 %v66, %v68
    %v70 = vrot.slane %v59, %v69
    %v72 = vunpack.c.l.s4 1983009808
    %v73 = vunpack.c.0.s8 %v72
    %v74 = vlaneseq
    %v75 = vshrl.u32 %v74, 7
    %v76 = vsub.s32 %v73, %v75
    %v77 = vrot.slane %v63, %v76
    %v78 = vcombine.high %v70, %v70
    %v79 = vcombine.high %v77, %v77
    %v80 = vcombine.high %v60, %v60
    %v82 = vunpack.c.l.s4 1983009808
    %v83 = vunpack.c.0.s8 %v82
    %v84 = vlaneseq
    %v85 = vshrl.u32 %v84, 7
    %v86 = vsub.s32 %v83, %v85
    %v87 = vrot.slane %v60, %v86
    %v89 = vunpack.c.l.s4 1983009808
    %v90 = vunpack.c.0.s8 %v89
    %v91 = vlaneseq
    %v92 = vshrl.u32 %v91, 7
    %v93 = vsub.s32 %v90, %v92
    %v94 = vrot.slane %v80, %v93
    %v95 = vcombine.high %v87, %v87
    %v96 = vcombine.high %v94, %v94
    %vm105 = vcmask 1041408
    %v106 = vsel %vm105, %v70, 0.0
    %v107 = vrot.slane %v106, 4
    %v108 = vadd.f32 %v106, %v107
    %v109 = vrot.slane %v108, 2
    %v110 = vadd.f32 %v108, %v109
    %v111 = vrot.slane %v110, 1
    %v112 = vadd.f32 %v110, %v111
    %v113 = vsel %vm105, %v78, 0.0
    %v114 = vrot.slane %v113, 4
    %v115 = vadd.f32 %v113, %v114
    %v116 = vrot.slane %v115, 2
    %v117 = vadd.f32 %v115, %v116
    %v118 = vrot.slane %v117, 1
    %v119 = vadd.f32 %v117, %v118
    %v120 = vsel %vm105, %v77, 0.0
    %v121 = vrot.slane %v120, 4
    %v122 = vadd.f32 %v120, %v121
    %v123 = vrot.slane %v122, 2
    %v124 = vadd.f32 %v122, %v123
    %v125 = vrot.slane %v124, 1
    %v126 = vadd.f32 %v124, %v125
    %v127 = vsel %vm105, %v79, 0.0
    %v128 = vrot.slane %v127, 4
    %v129 = vadd.f32 %v127, %v128
    %v130 = vrot.slane %v129, 2
    %v131 = vadd.f32 %v129, %v130
    %v132 = vrot.slane %v131, 1
    %v133 = vadd.f32 %v131, %v132
    %v134 = vsel %vm105, %v87, 0.0
    %v135 = vrot.slane %v134, 4
    %v136 = vadd.f32 %v134, %v135
    %v137 = vrot.slane %v136, 2
    %v138 = vadd.f32 %v136, %v137
    %v139 = vrot.slane %v138, 1
    %v140 = vadd.f32 %v138, %v139
    %v141 = vsel %vm105, %v95, 0.0
    %v142 = vrot.slane %v141, 4
    %v143 = vadd.f32 %v141, %v142
    %v144 = vrot.slane %v143, 2
    %v145 = vadd.f32 %v143, %v144
    %v146 = vrot.slane %v145, 1
    %v147 = vadd.f32 %v145, %v146
    %v148 = vsel %vm105, %v94, 0.0
    %v149 = vrot.slane %v148, 4
    %v150 = vadd.f32 %v148, %v149
    %v151 = vrot.slane %v150, 2
    %v152 = vadd.f32 %v150, %v151
    %v153 = vrot.slane %v152, 1
    %v154 = vadd.f32 %v152, %v153
    %v155 = vsel %vm105, %v96, 0.0
    %v156 = vrot.slane %v155, 4
    %v157 = vadd.f32 %v155, %v156
    %v158 = vrot.slane %v157, 2
    %v159 = vadd.f32 %v157, %v158
    %v160 = vrot.slane %v159, 1
    %v161 = vadd.f32 %v159, %v160
    %v162 = vrcp.pop 2.0
    %v163 = vmul.f32 %v112, %v162
    %v164 = vmul.f32 %v119, %v162
    %v165 = vmul.f32 %v126, %v162
    %v166 = vmul.f32 %v133, %v162
    %v167 = vmul.f32 %v140, %v162
    %v168 = vmul.f32 %v147, %v162
    %v169 = vmul.f32 %v154, %v162
    %v170 = vmul.f32 %v161, %v162
    %v179 = vcombine.low %v163, %v164
    %v180 = vcombine.low %v165, %v166
    %v182 = vunpack.c.l.s4 1983009808
    %v183 = vunpack.c.0.s8 %v182
    %v184 = vlaneseq
    %v185 = vshrl.u32 %v184, 7
    %v186 = vsub.s32 %v183, %v185
    %v187 = vrot.slane %v179, %v186
    %v189 = vunpack.c.l.s4 1983009808
    %v190 = vunpack.c.0.s8 %v189
    %v191 = vlaneseq
    %v192 = vshrl.u32 %v191, 7
    %v193 = vsub.s32 %v190, %v192
    %v194 = vrot.slane %v180, %v193
    %v195 = vcombine.low %v187, %v194
    %v196 = vcombine.low %v167, %v168
    %v197 = vcombine.low %v169, %v170
    %v199 = vunpack.c.l.s4 1983009808
    %v200 = vunpack.c.0.s8 %v199
    %v201 = vlaneseq
    %v202 = vshrl.u32 %v201, 7
    %v203 = vsub.s32 %v200, %v202
    %v204 = vrot.slane %v196, %v203
    %v206 = vunpack.c.l.s4 1983009808
    %v207 = vunpack.c.0.s8 %v206
    %v208 = vlaneseq
    %v209 = vshrl.u32 %v208, 7
    %v210 = vsub.s32 %v207, %v209
    %v211 = vrot.slane %v197, %v210
    %v212 = vcombine.low %v204, %v211
    %v215 = vsub.f32 %v59, %v195
    %v216 = vsub.f32 %v60, %v212
    %v219 = vcombine.high %v215, %v215
    %v221 = vunpack.c.l.s4 1983009808
    %v222 = vunpack.c.0.s8 %v221
    %v223 = vlaneseq
    %v224 = vshrl.u32 %v223, 7
    %v225 = vsub.s32 %v222, %v224
    %v226 = vrot.slane %v215, %v225
    %v228 = vunpack.c.l.s4 1983009808
    %v229 = vunpack.c.0.s8 %v228
    %v230 = vlaneseq
    %v231 = vshrl.u32 %v230, 7
    %v232 = vsub.s32 %v229, %v231
    %v233 = vrot.slane %v219, %v232
    %v234 = vcombine.high %v226, %v226
    %v235 = vcombine.high %v233, %v233
    %v236 = vcombine.high %v216, %v216
    %v238 = vunpack.c.l.s4 1983009808
    %v239 = vunpack.c.0.s8 %v238
    %v240 = vlaneseq
    %v241 = vshrl.u32 %v240, 7
    %v242 = vsub.s32 %v239, %v241
    %v243 = vrot.slane %v216, %v242
    %v245 = vunpack.c.l.s4 1983009808
    %v246 = vunpack.c.0.s8 %v245
    %v247 = vlaneseq
    %v248 = vshrl.u32 %v247, 7
    %v249 = vsub.s32 %v246, %v248
    %v250 = vrot.slane %v236, %v249
    %v251 = vcombine.high %v243, %v243
    %v252 = vcombine.high %v250, %v250
    %261 = vmatprep.subr.mxu0 0.0
    %262 = vmatpush1.xpose.msra.mxu0 0.0
    %263 = vmatprep.subr.mxu0 0.0
    %264 = vmatpush1.xpose.msra.mxu0 0.0
    %265 = vmatprep.subr.mxu0 0.0
    %266 = vmatpush1.xpose.msra.mxu0 0.0
    %267 = vmatprep.subr.mxu0 0.0
    %268 = vmatpush1.xpose.msra.mxu0 0.0
    %269 = vmatprep.subr.mxu0 0.0
    %270 = vmatpush1.xpose.msra.mxu0 0.0
    %271 = vmatprep.subr.mxu0 0.0
    %272 = vmatpush1.xpose.msra.mxu0 0.0
    %273 = vmatprep.subr.mxu0 0.0
    %274 = vmatpush1.xpose.msra.mxu0 0.0
    %275 = vmatprep.subr.mxu0 0.0
    %276 = vmatpush1.xpose.msra.mxu0 0.0
    %277 = vmatprep.subr.mxu0 0.0
    %278 = vmatpush1.xpose.msra.mxu0 0.0
    %279 = vmatprep.subr.mxu0 0.0
    %280 = vmatpush1.xpose.msra.mxu0 0.0
    %281 = vmatprep.subr.mxu0 0.0
    %282 = vmatpush1.xpose.msra.mxu0 0.0
    %283 = vmatprep.subr.mxu0 0.0
    %284 = vmatpush1.xpose.msra.mxu0 0.0
    %285 = vmatprep.subr.mxu0 0.0
    %286 = vmatpush1.xpose.msra.mxu0 0.0
    %287 = vmatprep.subr.mxu0 0.0
    %288 = vmatpush1.xpose.msra.mxu0 0.0
    %289 = vmatprep.subr.mxu0 0.0
    %290 = vmatpush1.xpose.msra.mxu0 0.0
    %291 = vmatprep.subr.mxu0 %v234
    %292 = vmatpush1.xpose.msra.mxu0 %v226
    %293 = vmatprep.subr.mxu0 0.0
    %294 = vmatpush2.xpose.msra.mxu0 0.0
    %295 = vmatprep.subr.mxu0 0.0
    %296 = vmatpush2.xpose.msra.mxu0 0.0
    %297 = vmatprep.subr.mxu0 0.0
    %298 = vmatpush2.xpose.msra.mxu0 0.0
    %299 = vmatprep.subr.mxu0 0.0
    %300 = vmatpush2.xpose.msra.mxu0 0.0
    %301 = vmatprep.subr.mxu0 0.0
    %302 = vmatpush2.xpose.msra.mxu0 0.0
    %303 = vmatprep.subr.mxu0 0.0
    %304 = vmatpush2.xpose.msra.mxu0 0.0
    %305 = vmatprep.subr.mxu0 0.0
    %306 = vmatpush2.xpose.msra.mxu0 0.0
    %307 = vmatprep.subr.mxu0 0.0
    %308 = vmatpush2.xpose.msra.mxu0 0.0
    %309 = vmatprep.subr.mxu0 0.0
    %310 = vmatpush2.xpose.msra.mxu0 0.0
    %311 = vmatprep.subr.mxu0 0.0
    %312 = vmatpush2.xpose.msra.mxu0 0.0
    %313 = vmatprep.subr.mxu0 0.0
    %314 = vmatpush2.xpose.msra.mxu0 0.0
    %315 = vmatprep.subr.mxu0 0.0
    %316 = vmatpush2.xpose.msra.mxu0 0.0
    %317 = vmatprep.subr.mxu0 0.0
    %318 = vmatpush2.xpose.msra.mxu0 0.0
    %319 = vmatprep.subr.mxu0 0.0
    %320 = vmatpush2.xpose.msra.mxu0 0.0
    %321 = vmatprep.subr.mxu0 0.0
    %322 = vmatpush2.xpose.msra.mxu0 0.0
    %323 = vmatprep.subr.mxu0 0.0
    %324 = vmatpush2.xpose.msra.mxu0 0.0
    %325 = vmatprep.mubr.f32.mxu0 %v234
    %326 = vmatmul.mubr.f32.gmra.mxu0 %v226
    %v327 = vpop.f32.mrf.mxu0
    %v328 = vadd.f32 0.0, %v327
    %v329 = vpop.f32.mrf.mxu0
    %330 = vdwg.mxu0
    %331 = vmatprep.subr.mxu0 0.0
    %332 = vmatpush1.xpose.msra.mxu0 0.0
    %333 = vmatprep.subr.mxu0 0.0
    %334 = vmatpush1.xpose.msra.mxu0 0.0
    %335 = vmatprep.subr.mxu0 0.0
    %336 = vmatpush1.xpose.msra.mxu0 0.0
    %337 = vmatprep.subr.mxu0 0.0
    %338 = vmatpush1.xpose.msra.mxu0 0.0
    %339 = vmatprep.subr.mxu0 0.0
    %340 = vmatpush1.xpose.msra.mxu0 0.0
    %341 = vmatprep.subr.mxu0 0.0
    %342 = vmatpush1.xpose.msra.mxu0 0.0
    %343 = vmatprep.subr.mxu0 0.0
    %344 = vmatpush1.xpose.msra.mxu0 0.0
    %345 = vmatprep.subr.mxu0 0.0
    %346 = vmatpush1.xpose.msra.mxu0 0.0
    %347 = vmatprep.subr.mxu0 0.0
    %348 = vmatpush1.xpose.msra.mxu0 0.0
    %349 = vmatprep.subr.mxu0 0.0
    %350 = vmatpush1.xpose.msra.mxu0 0.0
    %351 = vmatprep.subr.mxu0 0.0
    %352 = vmatpush1.xpose.msra.mxu0 0.0
    %353 = vmatprep.subr.mxu0 0.0
    %354 = vmatpush1.xpose.msra.mxu0 0.0
    %355 = vmatprep.subr.mxu0 0.0
    %356 = vmatpush1.xpose.msra.mxu0 0.0
    %357 = vmatprep.subr.mxu0 0.0
    %358 = vmatpush1.xpose.msra.mxu0 0.0
    %359 = vmatprep.subr.mxu0 0.0
    %360 = vmatpush1.xpose.msra.mxu0 0.0
    %361 = vmatprep.subr.mxu0 %v235
    %362 = vmatpush1.xpose.msra.mxu0 %v233
    %363 = vmatprep.subr.mxu0 0.0
    %364 = vmatpush2.xpose.msra.mxu0 0.0
    %365 = vmatprep.subr.mxu0 0.0
    %366 = vmatpush2.xpose.msra.mxu0 0.0
    %367 = vmatprep.subr.mxu0 0.0
    %368 = vmatpush2.xpose.msra.mxu0 0.0
    %369 = vmatprep.subr.mxu0 0.0
    %370 = vmatpush2.xpose.msra.mxu0 0.0
    %371 = vmatprep.subr.mxu0 0.0
    %372 = vmatpush2.xpose.msra.mxu0 0.0
    %373 = vmatprep.subr.mxu0 0.0
    %374 = vmatpush2.xpose.msra.mxu0 0.0
    %375 = vmatprep.subr.mxu0 0.0
    %376 = vmatpush2.xpose.msra.mxu0 0.0
    %377 = vmatprep.subr.mxu0 0.0
    %378 = vmatpush2.xpose.msra.mxu0 0.0
    %379 = vmatprep.subr.mxu0 0.0
    %380 = vmatpush2.xpose.msra.mxu0 0.0
    %381 = vmatprep.subr.mxu0 0.0
    %382 = vmatpush2.xpose.msra.mxu0 0.0
    %383 = vmatprep.subr.mxu0 0.0
    %384 = vmatpush2.xpose.msra.mxu0 0.0
    %385 = vmatprep.subr.mxu0 0.0
    %386 = vmatpush2.xpose.msra.mxu0 0.0
    %387 = vmatprep.subr.mxu0 0.0
    %388 = vmatpush2.xpose.msra.mxu0 0.0
    %389 = vmatprep.subr.mxu0 0.0
    %390 = vmatpush2.xpose.msra.mxu0 0.0
    %391 = vmatprep.subr.mxu0 0.0
    %392 = vmatpush2.xpose.msra.mxu0 0.0
    %393 = vmatprep.subr.mxu0 0.0
    %394 = vmatpush2.xpose.msra.mxu0 0.0
    %395 = vmatprep.mubr.f32.mxu0 %v235
    %396 = vmatmul.mubr.f32.gmra.mxu0 %v233
    %v397 = vpop.f32.mrf.mxu0
    %v398 = vadd.f32 %v328, %v397
    %v399 = vpop.f32.mrf.mxu0
    %400 = vdwg.mxu0
    %401 = vmatprep.subr.mxu0 0.0
    %402 = vmatpush1.xpose.msra.mxu0 0.0
    %403 = vmatprep.subr.mxu0 0.0
    %404 = vmatpush1.xpose.msra.mxu0 0.0
    %405 = vmatprep.subr.mxu0 0.0
    %406 = vmatpush1.xpose.msra.mxu0 0.0
    %407 = vmatprep.subr.mxu0 0.0
    %408 = vmatpush1.xpose.msra.mxu0 0.0
    %409 = vmatprep.subr.mxu0 0.0
    %410 = vmatpush1.xpose.msra.mxu0 0.0
    %411 = vmatprep.subr.mxu0 0.0
    %412 = vmatpush1.xpose.msra.mxu0 0.0
    %413 = vmatprep.subr.mxu0 0.0
    %414 = vmatpush1.xpose.msra.mxu0 0.0
    %415 = vmatprep.subr.mxu0 0.0
    %416 = vmatpush1.xpose.msra.mxu0 0.0
    %417 = vmatprep.subr.mxu0 0.0
    %418 = vmatpush1.xpose.msra.mxu0 0.0
    %419 = vmatprep.subr.mxu0 0.0
    %420 = vmatpush1.xpose.msra.mxu0 0.0
    %421 = vmatprep.subr.mxu0 0.0
    %422 = vmatpush1.xpose.msra.mxu0 0.0
    %423 = vmatprep.subr.mxu0 0.0
    %424 = vmatpush1.xpose.msra.mxu0 0.0
    %425 = vmatprep.subr.mxu0 0.0
    %426 = vmatpush1.xpose.msra.mxu0 0.0
    %427 = vmatprep.subr.mxu0 0.0
    %428 = vmatpush1.xpose.msra.mxu0 0.0
    %429 = vmatprep.subr.mxu0 0.0
    %430 = vmatpush1.xpose.msra.mxu0 0.0
    %431 = vmatprep.subr.mxu0 %v251
    %432 = vmatpush1.xpose.msra.mxu0 %v243
    %433 = vmatprep.subr.mxu0 0.0
    %434 = vmatpush2.xpose.msra.mxu0 0.0
    %435 = vmatprep.subr.mxu0 0.0
    %436 = vmatpush2.xpose.msra.mxu0 0.0
    %437 = vmatprep.subr.mxu0 0.0
    %438 = vmatpush2.xpose.msra.mxu0 0.0
    %439 = vmatprep.subr.mxu0 0.0
    %440 = vmatpush2.xpose.msra.mxu0 0.0
    %441 = vmatprep.subr.mxu0 0.0
    %442 = vmatpush2.xpose.msra.mxu0 0.0
    %443 = vmatprep.subr.mxu0 0.0
    %444 = vmatpush2.xpose.msra.mxu0 0.0
    %445 = vmatprep.subr.mxu0 0.0
    %446 = vmatpush2.xpose.msra.mxu0 0.0
    %447 = vmatprep.subr.mxu0 0.0
    %448 = vmatpush2.xpose.msra.mxu0 0.0
    %449 = vmatprep.subr.mxu0 0.0
    %450 = vmatpush2.xpose.msra.mxu0 0.0
    %451 = vmatprep.subr.mxu0 0.0
    %452 = vmatpush2.xpose.msra.mxu0 0.0
    %453 = vmatprep.subr.mxu0 0.0
    %454 = vmatpush2.xpose.msra.mxu0 0.0
    %455 = vmatprep.subr.mxu0 0.0
    %456 = vmatpush2.xpose.msra.mxu0 0.0
    %457 = vmatprep.subr.mxu0 0.0
    %458 = vmatpush2.xpose.msra.mxu0 0.0
    %459 = vmatprep.subr.mxu0 0.0
    %460 = vmatpush2.xpose.msra.mxu0 0.0
    %461 = vmatprep.subr.mxu0 0.0
    %462 = vmatpush2.xpose.msra.mxu0 0.0
    %463 = vmatprep.subr.mxu0 0.0
    %464 = vmatpush2.xpose.msra.mxu0 0.0
    %465 = vmatprep.mubr.f32.mxu0 %v251
    %466 = vmatmul.mubr.f32.gmra.mxu0 %v243
    %v467 = vpop.f32.mrf.mxu0
    %v468 = vadd.f32 %v398, %v467
    %v469 = vpop.f32.mrf.mxu0
    %470 = vdwg.mxu0
    %471 = vmatprep.subr.mxu0 0.0
    %472 = vmatpush1.xpose.msra.mxu0 0.0
    %473 = vmatprep.subr.mxu0 0.0
    %474 = vmatpush1.xpose.msra.mxu0 0.0
    %475 = vmatprep.subr.mxu0 0.0
    %476 = vmatpush1.xpose.msra.mxu0 0.0
    %477 = vmatprep.subr.mxu0 0.0
    %478 = vmatpush1.xpose.msra.mxu0 0.0
    %479 = vmatprep.subr.mxu0 0.0
    %480 = vmatpush1.xpose.msra.mxu0 0.0
    %481 = vmatprep.subr.mxu0 0.0
    %482 = vmatpush1.xpose.msra.mxu0 0.0
    %483 = vmatprep.subr.mxu0 0.0
    %484 = vmatpush1.xpose.msra.mxu0 0.0
    %485 = vmatprep.subr.mxu0 0.0
    %486 = vmatpush1.xpose.msra.mxu0 0.0
    %487 = vmatprep.subr.mxu0 0.0
    %488 = vmatpush1.xpose.msra.mxu0 0.0
    %489 = vmatprep.subr.mxu0 0.0
    %490 = vmatpush1.xpose.msra.mxu0 0.0
    %491 = vmatprep.subr.mxu0 0.0
    %492 = vmatpush1.xpose.msra.mxu0 0.0
    %493 = vmatprep.subr.mxu0 0.0
    %494 = vmatpush1.xpose.msra.mxu0 0.0
    %495 = vmatprep.subr.mxu0 0.0
    %496 = vmatpush1.xpose.msra.mxu0 0.0
    %497 = vmatprep.subr.mxu0 0.0
    %498 = vmatpush1.xpose.msra.mxu0 0.0
    %499 = vmatprep.subr.mxu0 0.0
    %500 = vmatpush1.xpose.msra.mxu0 0.0
    %501 = vmatprep.subr.mxu0 %v252
    %502 = vmatpush1.xpose.msra.mxu0 %v250
    %503 = vmatprep.subr.mxu0 0.0
    %504 = vmatpush2.xpose.msra.mxu0 0.0
    %505 = vmatprep.subr.mxu0 0.0
    %506 = vmatpush2.xpose.msra.mxu0 0.0
    %507 = vmatprep.subr.mxu0 0.0
    %508 = vmatpush2.xpose.msra.mxu0 0.0
    %509 = vmatprep.subr.mxu0 0.0
    %510 = vmatpush2.xpose.msra.mxu0 0.0
    %511 = vmatprep.subr.mxu0 0.0
    %512 = vmatpush2.xpose.msra.mxu0 0.0
    %513 = vmatprep.subr.mxu0 0.0
    %514 = vmatpush2.xpose.msra.mxu0 0.0
    %515 = vmatprep.subr.mxu0 0.0
    %516 = vmatpush2.xpose.msra.mxu0 0.0
    %517 = vmatprep.subr.mxu0 0.0
    %518 = vmatpush2.xpose.msra.mxu0 0.0
    %519 = vmatprep.subr.mxu0 0.0
    %520 = vmatpush2.xpose.msra.mxu0 0.0
    %521 = vmatprep.subr.mxu0 0.0
    %522 = vmatpush2.xpose.msra.mxu0 0.0
    %523 = vmatprep.subr.mxu0 0.0
    %524 = vmatpush2.xpose.msra.mxu0 0.0
    %525 = vmatprep.subr.mxu0 0.0
    %526 = vmatpush2.xpose.msra.mxu0 0.0
    %527 = vmatprep.subr.mxu0 0.0
    %528 = vmatpush2.xpose.msra.mxu0 0.0
    %529 = vmatprep.subr.mxu0 0.0
    %530 = vmatpush2.xpose.msra.mxu0 0.0
    %531 = vmatprep.subr.mxu0 0.0
    %532 = vmatpush2.xpose.msra.mxu0 0.0
    %533 = vmatprep.subr.mxu0 0.0
    %534 = vmatpush2.xpose.msra.mxu0 0.0
    %535 = vmatprep.mubr.f32.mxu0 %v252
    %536 = vmatmul.mubr.f32.gmra.mxu0 %v250
    %v537 = vpop.f32.mrf.mxu0
    %v538 = vadd.f32 %v468, %v537
    %v539 = vpop.f32.mrf.mxu0
    %540 = vdwg.mxu0
    %v541 = vadd.f32 %v58, %v538
    %vm542 = vcmask 9216
    %543 = vst.msk [vmem:[#allocation7] sm:$0x3] %vm542, %v541
    %v544 = vld [vmem:[#allocation8] sm:$0x3]
    %v545 = vld [vmem:[#allocation5] sm:$0xff]
    %v546 = vld [vmem:[#allocation5 + $0x8] sm:$0xff]
    %v549 = vcombine.high %v545, %v545
    %v551 = vunpack.c.l.s4 1983009808
    %v552 = vunpack.c.0.s8 %v551
    %v553 = vlaneseq
    %v554 = vshrl.u32 %v553, 7
    %v555 = vsub.s32 %v552, %v554
    %v556 = vrot.slane %v545, %v555
    %v558 = vunpack.c.l.s4 1983009808
    %v559 = vunpack.c.0.s8 %v558
    %v560 = vlaneseq
    %v561 = vshrl.u32 %v560, 7
    %v562 = vsub.s32 %v559, %v561
    %v563 = vrot.slane %v549, %v562
    %v564 = vcombine.high %v556, %v556
    %v565 = vcombine.high %v563, %v563
    %v566 = vcombine.high %v546, %v546
    %v568 = vunpack.c.l.s4 1983009808
    %v569 = vunpack.c.0.s8 %v568
    %v570 = vlaneseq
    %v571 = vshrl.u32 %v570, 7
    %v572 = vsub.s32 %v569, %v571
    %v573 = vrot.slane %v546, %v572
    %v575 = vunpack.c.l.s4 1983009808
    %v576 = vunpack.c.0.s8 %v575
    %v577 = vlaneseq
    %v578 = vshrl.u32 %v577, 7
    %v579 = vsub.s32 %v576, %v578
    %v580 = vrot.slane %v566, %v579
    %v581 = vcombine.high %v573, %v573
    %v582 = vcombine.high %v580, %v580
    %v591 = vsel %vm105, %v556, 0.0
    %v592 = vrot.slane %v591, 4
    %v593 = vadd.f32 %v591, %v592
    %v594 = vrot.slane %v593, 2
    %v595 = vadd.f32 %v593, %v594
    %v596 = vrot.slane %v595, 1
    %v597 = vadd.f32 %v595, %v596
    %v598 = vsel %vm105, %v564, 0.0
    %v599 = vrot.slane %v598, 4
    %v600 = vadd.f32 %v598, %v599
    %v601 = vrot.slane %v600, 2
    %v602 = vadd.f32 %v600, %v601
    %v603 = vrot.slane %v602, 1
    %v604 = vadd.f32 %v602, %v603
    %v605 = vsel %vm105, %v563, 0.0
    %v606 = vrot.slane %v605, 4
    %v607 = vadd.f32 %v605, %v606
    %v608 = vrot.slane %v607, 2
    %v609 = vadd.f32 %v607, %v608
    %v610 = vrot.slane %v609, 1
    %v611 = vadd.f32 %v609, %v610
    %v612 = vsel %vm105, %v565, 0.0
    %v613 = vrot.slane %v612, 4
    %v614 = vadd.f32 %v612, %v613
    %v615 = vrot.slane %v614, 2
    %v616 = vadd.f32 %v614, %v615
    %v617 = vrot.slane %v616, 1
    %v618 = vadd.f32 %v616, %v617
    %v619 = vsel %vm105, %v573, 0.0
    %v620 = vrot.slane %v619, 4
    %v621 = vadd.f32 %v619, %v620
    %v622 = vrot.slane %v621, 2
    %v623 = vadd.f32 %v621, %v622
    %v624 = vrot.slane %v623, 1
    %v625 = vadd.f32 %v623, %v624
    %v626 = vsel %vm105, %v581, 0.0
    %v627 = vrot.slane %v626, 4
    %v628 = vadd.f32 %v626, %v627
    %v629 = vrot.slane %v628, 2
    %v630 = vadd.f32 %v628, %v629
    %v631 = vrot.slane %v630, 1
    %v632 = vadd.f32 %v630, %v631
    %v633 = vsel %vm105, %v580, 0.0
    %v634 = vrot.slane %v633, 4
    %v635 = vadd.f32 %v633, %v634
    %v636 = vrot.slane %v635, 2
    %v637 = vadd.f32 %v635, %v636
    %v638 = vrot.slane %v637, 1
    %v639 = vadd.f32 %v637, %v638
    %v640 = vsel %vm105, %v582, 0.0
    %v641 = vrot.slane %v640, 4
    %v642 = vadd.f32 %v640, %v641
    %v643 = vrot.slane %v642, 2
    %v644 = vadd.f32 %v642, %v643
    %v645 = vrot.slane %v644, 1
    %v646 = vadd.f32 %v644, %v645
    %v647 = vmul.f32 %v597, %v162
    %v648 = vmul.f32 %v604, %v162
    %v649 = vmul.f32 %v611, %v162
    %v650 = vmul.f32 %v618, %v162
    %v651 = vmul.f32 %v625, %v162
    %v652 = vmul.f32 %v632, %v162
    %v653 = vmul.f32 %v639, %v162
    %v654 = vmul.f32 %v646, %v162
    %v663 = vcombine.low %v647, %v648
    %v664 = vcombine.low %v649, %v650
    %v666 = vunpack.c.l.s4 1983009808
    %v667 = vunpack.c.0.s8 %v666
    %v668 = vlaneseq
    %v669 = vshrl.u32 %v668, 7
    %v670 = vsub.s32 %v667, %v669
    %v671 = vrot.slane %v663, %v670
    %v673 = vunpack.c.l.s4 1983009808
    %v674 = vunpack.c.0.s8 %v673
    %v675 = vlaneseq
    %v676 = vshrl.u32 %v675, 7
    %v677 = vsub.s32 %v674, %v676
    %v678 = vrot.slane %v664, %v677
    %v679 = vcombine.low %v671, %v678
    %v680 = vcombine.low %v651, %v652
    %v681 = vcombine.low %v653, %v654
    %v683 = vunpack.c.l.s4 1983009808
    %v684 = vunpack.c.0.s8 %v683
    %v685 = vlaneseq
    %v686 = vshrl.u32 %v685, 7
    %v687 = vsub.s32 %v684, %v686
    %v688 = vrot.slane %v680, %v687
    %v690 = vunpack.c.l.s4 1983009808
    %v691 = vunpack.c.0.s8 %v690
    %v692 = vlaneseq
    %v693 = vshrl.u32 %v692, 7
    %v694 = vsub.s32 %v691, %v693
    %v695 = vrot.slane %v681, %v694
    %v696 = vcombine.low %v688, %v695
    %v699 = vsub.f32 %v545, %v679
    %v700 = vsub.f32 %v546, %v696
    %v703 = vcombine.high %v699, %v699
    %v705 = vunpack.c.l.s4 1983009808
    %v706 = vunpack.c.0.s8 %v705
    %v707 = vlaneseq
    %v708 = vshrl.u32 %v707, 7
    %v709 = vsub.s32 %v706, %v708
    %v710 = vrot.slane %v699, %v709
    %v712 = vunpack.c.l.s4 1983009808
    %v713 = vunpack.c.0.s8 %v712
    %v714 = vlaneseq
    %v715 = vshrl.u32 %v714, 7
    %v716 = vsub.s32 %v713, %v715
    %v717 = vrot.slane %v703, %v716
    %v718 = vcombine.high %v710, %v710
    %v719 = vcombine.high %v717, %v717
    %v720 = vcombine.high %v700, %v700
    %v722 = vunpack.c.l.s4 1983009808
    %v723 = vunpack.c.0.s8 %v722
    %v724 = vlaneseq
    %v725 = vshrl.u32 %v724, 7
    %v726 = vsub.s32 %v723, %v725
    %v727 = vrot.slane %v700, %v726
    %v729 = vunpack.c.l.s4 1983009808
    %v730 = vunpack.c.0.s8 %v729
    %v731 = vlaneseq
    %v732 = vshrl.u32 %v731, 7
    %v733 = vsub.s32 %v730, %v732
    %v734 = vrot.slane %v720, %v733
    %v735 = vcombine.high %v727, %v727
    %v736 = vcombine.high %v734, %v734
    %745 = vmatprep.subr.mxu0 0.0
    %746 = vmatpush1.xpose.msra.mxu0 0.0
    %747 = vmatprep.subr.mxu0 0.0
    %748 = vmatpush1.xpose.msra.mxu0 0.0
    %749 = vmatprep.subr.mxu0 0.0
    %750 = vmatpush1.xpose.msra.mxu0 0.0
    %751 = vmatprep.subr.mxu0 0.0
    %752 = vmatpush1.xpose.msra.mxu0 0.0
    %753 = vmatprep.subr.mxu0 0.0
    %754 = vmatpush1.xpose.msra.mxu0 0.0
    %755 = vmatprep.subr.mxu0 0.0
    %756 = vmatpush1.xpose.msra.mxu0 0.0
    %757 = vmatprep.subr.mxu0 0.0
    %758 = vmatpush1.xpose.msra.mxu0 0.0
    %759 = vmatprep.subr.mxu0 0.0
    %760 = vmatpush1.xpose.msra.mxu0 0.0
    %761 = vmatprep.subr.mxu0 0.0
    %762 = vmatpush1.xpose.msra.mxu0 0.0
    %763 = vmatprep.subr.mxu0 0.0
    %764 = vmatpush1.xpose.msra.mxu0 0.0
    %765 = vmatprep.subr.mxu0 0.0
    %766 = vmatpush1.xpose.msra.mxu0 0.0
    %767 = vmatprep.subr.mxu0 0.0
    %768 = vmatpush1.xpose.msra.mxu0 0.0
    %769 = vmatprep.subr.mxu0 0.0
    %770 = vmatpush1.xpose.msra.mxu0 0.0
    %771 = vmatprep.subr.mxu0 0.0
    %772 = vmatpush1.xpose.msra.mxu0 0.0
    %773 = vmatprep.subr.mxu0 0.0
    %774 = vmatpush1.xpose.msra.mxu0 0.0
    %775 = vmatprep.subr.mxu0 %v718
    %776 = vmatpush1.xpose.msra.mxu0 %v710
    %777 = vmatprep.subr.mxu0 0.0
    %778 = vmatpush2.xpose.msra.mxu0 0.0
    %779 = vmatprep.subr.mxu0 0.0
    %780 = vmatpush2.xpose.msra.mxu0 0.0
    %781 = vmatprep.subr.mxu0 0.0
    %782 = vmatpush2.xpose.msra.mxu0 0.0
    %783 = vmatprep.subr.mxu0 0.0
    %784 = vmatpush2.xpose.msra.mxu0 0.0
    %785 = vmatprep.subr.mxu0 0.0
    %786 = vmatpush2.xpose.msra.mxu0 0.0
    %787 = vmatprep.subr.mxu0 0.0
    %788 = vmatpush2.xpose.msra.mxu0 0.0
    %789 = vmatprep.subr.mxu0 0.0
    %790 = vmatpush2.xpose.msra.mxu0 0.0
    %791 = vmatprep.subr.mxu0 0.0
    %792 = vmatpush2.xpose.msra.mxu0 0.0
    %793 = vmatprep.subr.mxu0 0.0
    %794 = vmatpush2.xpose.msra.mxu0 0.0
    %795 = vmatprep.subr.mxu0 0.0
    %796 = vmatpush2.xpose.msra.mxu0 0.0
    %797 = vmatprep.subr.mxu0 0.0
    %798 = vmatpush2.xpose.msra.mxu0 0.0
    %799 = vmatprep.subr.mxu0 0.0
    %800 = vmatpush2.xpose.msra.mxu0 0.0
    %801 = vmatprep.subr.mxu0 0.0
    %802 = vmatpush2.xpose.msra.mxu0 0.0
    %803 = vmatprep.subr.mxu0 0.0
    %804 = vmatpush2.xpose.msra.mxu0 0.0
    %805 = vmatprep.subr.mxu0 0.0
    %806 = vmatpush2.xpose.msra.mxu0 0.0
    %807 = vmatprep.subr.mxu0 0.0
    %808 = vmatpush2.xpose.msra.mxu0 0.0
    %809 = vmatprep.mubr.f32.mxu0 %v718
    %810 = vmatmul.mubr.f32.gmra.mxu0 %v710
    %v811 = vpop.f32.mrf.mxu0
    %v812 = vadd.f32 0.0, %v811
    %v813 = vpop.f32.mrf.mxu0
    %814 = vdwg.mxu0
    %815 = vmatprep.subr.mxu0 0.0
    %816 = vmatpush1.xpose.msra.mxu0 0.0
    %817 = vmatprep.subr.mxu0 0.0
    %818 = vmatpush1.xpose.msra.mxu0 0.0
    %819 = vmatprep.subr.mxu0 0.0
    %820 = vmatpush1.xpose.msra.mxu0 0.0
    %821 = vmatprep.subr.mxu0 0.0
    %822 = vmatpush1.xpose.msra.mxu0 0.0
    %823 = vmatprep.subr.mxu0 0.0
    %824 = vmatpush1.xpose.msra.mxu0 0.0
    %825 = vmatprep.subr.mxu0 0.0
    %826 = vmatpush1.xpose.msra.mxu0 0.0
    %827 = vmatprep.subr.mxu0 0.0
    %828 = vmatpush1.xpose.msra.mxu0 0.0
    %829 = vmatprep.subr.mxu0 0.0
    %830 = vmatpush1.xpose.msra.mxu0 0.0
    %831 = vmatprep.subr.mxu0 0.0
    %832 = vmatpush1.xpose.msra.mxu0 0.0
    %833 = vmatprep.subr.mxu0 0.0
    %834 = vmatpush1.xpose.msra.mxu0 0.0
    %835 = vmatprep.subr.mxu0 0.0
    %836 = vmatpush1.xpose.msra.mxu0 0.0
    %837 = vmatprep.subr.mxu0 0.0
    %838 = vmatpush1.xpose.msra.mxu0 0.0
    %839 = vmatprep.subr.mxu0 0.0
    %840 = vmatpush1.xpose.msra.mxu0 0.0
    %841 = vmatprep.subr.mxu0 0.0
    %842 = vmatpush1.xpose.msra.mxu0 0.0
    %843 = vmatprep.subr.mxu0 0.0
    %844 = vmatpush1.xpose.msra.mxu0 0.0
    %845 = vmatprep.subr.mxu0 %v719
    %846 = vmatpush1.xpose.msra.mxu0 %v717
    %847 = vmatprep.subr.mxu0 0.0
    %848 = vmatpush2.xpose.msra.mxu0 0.0
    %849 = vmatprep.subr.mxu0 0.0
    %850 = vmatpush2.xpose.msra.mxu0 0.0
    %851 = vmatprep.subr.mxu0 0.0
    %852 = vmatpush2.xpose.msra.mxu0 0.0
    %853 = vmatprep.subr.mxu0 0.0
    %854 = vmatpush2.xpose.msra.mxu0 0.0
    %855 = vmatprep.subr.mxu0 0.0
    %856 = vmatpush2.xpose.msra.mxu0 0.0
    %857 = vmatprep.subr.mxu0 0.0
    %858 = vmatpush2.xpose.msra.mxu0 0.0
    %859 = vmatprep.subr.mxu0 0.0
    %860 = vmatpush2.xpose.msra.mxu0 0.0
    %861 = vmatprep.subr.mxu0 0.0
    %862 = vmatpush2.xpose.msra.mxu0 0.0
    %863 = vmatprep.subr.mxu0 0.0
    %864 = vmatpush2.xpose.msra.mxu0 0.0
    %865 = vmatprep.subr.mxu0 0.0
    %866 = vmatpush2.xpose.msra.mxu0 0.0
    %867 = vmatprep.subr.mxu0 0.0
    %868 = vmatpush2.xpose.msra.mxu0 0.0
    %869 = vmatprep.subr.mxu0 0.0
    %870 = vmatpush2.xpose.msra.mxu0 0.0
    %871 = vmatprep.subr.mxu0 0.0
    %872 = vmatpush2.xpose.msra.mxu0 0.0
    %873 = vmatprep.subr.mxu0 0.0
    %874 = vmatpush2.xpose.msra.mxu0 0.0
    %875 = vmatprep.subr.mxu0 0.0
    %876 = vmatpush2.xpose.msra.mxu0 0.0
    %877 = vmatprep.subr.mxu0 0.0
    %878 = vmatpush2.xpose.msra.mxu0 0.0
    %879 = vmatprep.mubr.f32.mxu0 %v719
    %880 = vmatmul.mubr.f32.gmra.mxu0 %v717
    %v881 = vpop.f32.mrf.mxu0
    %v882 = vadd.f32 %v812, %v881
    %v883 = vpop.f32.mrf.mxu0
    %884 = vdwg.mxu0
    %885 = vmatprep.subr.mxu0 0.0
    %886 = vmatpush1.xpose.msra.mxu0 0.0
    %887 = vmatprep.subr.mxu0 0.0
    %888 = vmatpush1.xpose.msra.mxu0 0.0
    %889 = vmatprep.subr.mxu0 0.0
    %890 = vmatpush1.xpose.msra.mxu0 0.0
    %891 = vmatprep.subr.mxu0 0.0
    %892 = vmatpush1.xpose.msra.mxu0 0.0
    %893 = vmatprep.subr.mxu0 0.0
    %894 = vmatpush1.xpose.msra.mxu0 0.0
    %895 = vmatprep.subr.mxu0 0.0
    %896 = vmatpush1.xpose.msra.mxu0 0.0
    %897 = vmatprep.subr.mxu0 0.0
    %898 = vmatpush1.xpose.msra.mxu0 0.0
    %899 = vmatprep.subr.mxu0 0.0
    %900 = vmatpush1.xpose.msra.mxu0 0.0
    %901 = vmatprep.subr.mxu0 0.0
    %902 = vmatpush1.xpose.msra.mxu0 0.0
    %903 = vmatprep.subr.mxu0 0.0
    %904 = vmatpush1.xpose.msra.mxu0 0.0
    %905 = vmatprep.subr.mxu0 0.0
    %906 = vmatpush1.xpose.msra.mxu0 0.0
    %907 = vmatprep.subr.mxu0 0.0
    %908 = vmatpush1.xpose.msra.mxu0 0.0
    %909 = vmatprep.subr.mxu0 0.0
    %910 = vmatpush1.xpose.msra.mxu0 0.0
    %911 = vmatprep.subr.mxu0 0.0
    %912 = vmatpush1.xpose.msra.mxu0 0.0
    %913 = vmatprep.subr.mxu0 0.0
    %914 = vmatpush1.xpose.msra.mxu0 0.0
    %915 = vmatprep.subr.mxu0 %v735
    %916 = vmatpush1.xpose.msra.mxu0 %v727
    %917 = vmatprep.subr.mxu0 0.0
    %918 = vmatpush2.xpose.msra.mxu0 0.0
    %919 = vmatprep.subr.mxu0 0.0
    %920 = vmatpush2.xpose.msra.mxu0 0.0
    %921 = vmatprep.subr.mxu0 0.0
    %922 = vmatpush2.xpose.msra.mxu0 0.0
    %923 = vmatprep.subr.mxu0 0.0
    %924 = vmatpush2.xpose.msra.mxu0 0.0
    %925 = vmatprep.subr.mxu0 0.0
    %926 = vmatpush2.xpose.msra.mxu0 0.0
    %927 = vmatprep.subr.mxu0 0.0
    %928 = vmatpush2.xpose.msra.mxu0 0.0
    %929 = vmatprep.subr.mxu0 0.0
    %930 = vmatpush2.xpose.msra.mxu0 0.0
    %931 = vmatprep.subr.mxu0 0.0
    %932 = vmatpush2.xpose.msra.mxu0 0.0
    %933 = vmatprep.subr.mxu0 0.0
    %934 = vmatpush2.xpose.msra.mxu0 0.0
    %935 = vmatprep.subr.mxu0 0.0
    %936 = vmatpush2.xpose.msra.mxu0 0.0
    %937 = vmatprep.subr.mxu0 0.0
    %938 = vmatpush2.xpose.msra.mxu0 0.0
    %939 = vmatprep.subr.mxu0 0.0
    %940 = vmatpush2.xpose.msra.mxu0 0.0
    %941 = vmatprep.subr.mxu0 0.0
    %942 = vmatpush2.xpose.msra.mxu0 0.0
    %943 = vmatprep.subr.mxu0 0.0
    %944 = vmatpush2.xpose.msra.mxu0 0.0
    %945 = vmatprep.subr.mxu0 0.0
    %946 = vmatpush2.xpose.msra.mxu0 0.0
    %947 = vmatprep.subr.mxu0 0.0
    %948 = vmatpush2.xpose.msra.mxu0 0.0
    %949 = vmatprep.mubr.f32.mxu0 %v735
    %950 = vmatmul.mubr.f32.gmra.mxu0 %v727
    %v951 = vpop.f32.mrf.mxu0
    %v952 = vadd.f32 %v882, %v951
    %v953 = vpop.f32.mrf.mxu0
    %954 = vdwg.mxu0
    %955 = vmatprep.subr.mxu0 0.0
    %956 = vmatpush1.xpose.msra.mxu0 0.0
    %957 = vmatprep.subr.mxu0 0.0
    %958 = vmatpush1.xpose.msra.mxu0 0.0
    %959 = vmatprep.subr.mxu0 0.0
    %960 = vmatpush1.xpose.msra.mxu0 0.0
    %961 = vmatprep.subr.mxu0 0.0
    %962 = vmatpush1.xpose.msra.mxu0 0.0
    %963 = vmatprep.subr.mxu0 0.0
    %964 = vmatpush1.xpose.msra.mxu0 0.0
    %965 = vmatprep.subr.mxu0 0.0
    %966 = vmatpush1.xpose.msra.mxu0 0.0
    %967 = vmatprep.subr.mxu0 0.0
    %968 = vmatpush1.xpose.msra.mxu0 0.0
    %969 = vmatprep.subr.mxu0 0.0
    %970 = vmatpush1.xpose.msra.mxu0 0.0
    %971 = vmatprep.subr.mxu0 0.0
    %972 = vmatpush1.xpose.msra.mxu0 0.0
    %973 = vmatprep.subr.mxu0 0.0
    %974 = vmatpush1.xpose.msra.mxu0 0.0
    %975 = vmatprep.subr.mxu0 0.0
    %976 = vmatpush1.xpose.msra.mxu0 0.0
    %977 = vmatprep.subr.mxu0 0.0
    %978 = vmatpush1.xpose.msra.mxu0 0.0
    %979 = vmatprep.subr.mxu0 0.0
    %980 = vmatpush1.xpose.msra.mxu0 0.0
    %981 = vmatprep.subr.mxu0 0.0
    %982 = vmatpush1.xpose.msra.mxu0 0.0
    %983 = vmatprep.subr.mxu0 0.0
    %984 = vmatpush1.xpose.msra.mxu0 0.0
    %985 = vmatprep.subr.mxu0 %v736
    %986 = vmatpush1.xpose.msra.mxu0 %v734
    %987 = vmatprep.subr.mxu0 0.0
    %988 = vmatpush2.xpose.msra.mxu0 0.0
    %989 = vmatprep.subr.mxu0 0.0
    %990 = vmatpush2.xpose.msra.mxu0 0.0
    %991 = vmatprep.subr.mxu0 0.0
    %992 = vmatpush2.xpose.msra.mxu0 0.0
    %993 = vmatprep.subr.mxu0 0.0
    %994 = vmatpush2.xpose.msra.mxu0 0.0
    %995 = vmatprep.subr.mxu0 0.0
    %996 = vmatpush2.xpose.msra.mxu0 0.0
    %997 = vmatprep.subr.mxu0 0.0
    %998 = vmatpush2.xpose.msra.mxu0 0.0
    %999 = vmatprep.subr.mxu0 0.0
    %1000 = vmatpush2.xpose.msra.mxu0 0.0
    %1001 = vmatprep.subr.mxu0 0.0
    %1002 = vmatpush2.xpose.msra.mxu0 0.0
    %1003 = vmatprep.subr.mxu0 0.0
    %1004 = vmatpush2.xpose.msra.mxu0 0.0
    %1005 = vmatprep.subr.mxu0 0.0
    %1006 = vmatpush2.xpose.msra.mxu0 0.0
    %1007 = vmatprep.subr.mxu0 0.0
    %1008 = vmatpush2.xpose.msra.mxu0 0.0
    %1009 = vmatprep.subr.mxu0 0.0
    %1010 = vmatpush2.xpose.msra.mxu0 0.0
    %1011 = vmatprep.subr.mxu0 0.0
    %1012 = vmatpush2.xpose.msra.mxu0 0.0
    %1013 = vmatprep.subr.mxu0 0.0
    %1014 = vmatpush2.xpose.msra.mxu0 0.0
    %1015 = vmatprep.subr.mxu0 0.0
    %1016 = vmatpush2.xpose.msra.mxu0 0.0
    %1017 = vmatprep.subr.mxu0 0.0
    %1018 = vmatpush2.xpose.msra.mxu0 0.0
    %1019 = vmatprep.mubr.f32.mxu0 %v736
    %1020 = vmatmul.mubr.f32.gmra.mxu0 %v734
    %v1021 = vpop.f32.mrf.mxu0
    %v1022 = vadd.f32 %v952, %v1021
    %v1023 = vpop.f32.mrf.mxu0
    %1024 = vdwg.mxu0
    %v1025 = vadd.f32 %v544, %v1022
    %1026 = vst.msk [vmem:[#allocation8] sm:$0x3] %vm542, %v1025
    // Predicated region
    $region22: #{tpu_custom_call.1} parent=1 // pred_check
      _
    $region23: #{tpu_custom_call.1} parent=1 // pred_check_branch
      %1028 = sbr.rel (0) target = $region25
    $region24: #{tpu_custom_call.1} parent=1 // pred_region
      %s1030 = ssub.s32 32, 32
      %1031 = vsyncadd [#allocation4], %s1030
      %s1033 = sshll.u32 [#allocation7], 4
      %s1034 = int_to_ptr.vmem [resolvable:$true] %s1033
      %1036 = dma.vmem_to_hbm [thread:$0]  %s1034, 32, %s2, [#allocation4]
    $region25: #{tpu_custom_call.1} parent=1 // pred_fallthru
      _
    // Predicated region
    $region26: #{tpu_custom_call.1} parent=1 // pred_check
      _
    $region27: #{tpu_custom_call.1} parent=1 // pred_check_branch
      %1038 = sbr.rel (0) target = $region29
    $region28: #{tpu_custom_call.1} parent=1 // pred_region
      %s1040 = ssub.s32 32, 32
      %1041 = vsyncadd [#allocation9], %s1040
      %s1043 = sshll.u32 [#allocation8], 4
      %s1044 = int_to_ptr.vmem [resolvable:$true] %s1043
      %1046 = dma.vmem_to_hbm [thread:$0]  %s1044, 32, %s3, [#allocation9]
    $region29: #{tpu_custom_call.1} parent=1 // pred_fallthru
      _
    // Predicated region
    $region30: #{tpu_custom_call.1} parent=1 // pred_check
      _
    $region31: #{tpu_custom_call.1} parent=1 // pred_check_branch
      %1048 = sbr.rel (0) target = $region33
    $region32: #{tpu_custom_call.1} parent=1 // pred_region
      %1049 = dma.done [#allocation4], 32
    $region33: #{tpu_custom_call.1} parent=1 // pred_fallthru
      _
    // Predicated region
    $region34: #{tpu_custom_call.1} parent=1 // pred_check
      _
    $region35: #{tpu_custom_call.1} parent=1 // pred_check_branch
      %1051 = sbr.rel (0) target = $region37
    $region36: #{tpu_custom_call.1} parent=1 // pred_region
      %1052 = dma.done [#allocation9], 32
    $region37: #{tpu_custom_call.1} parent=1 // pred_fallthru
      _
    %1053 = vsyncpa [#allocation3], 1
    %1054 = vsyncpa [#allocation6], 1
    %1055 = vsyncpa [#allocation4], 1
    %1056 = vsyncpa [#allocation9], 1

</llo_original>
